<compile_context>
chip_gen: v7x
topology: tpu7x:2x2x1
jax: 0.10.0
libtpu: 0.0.40
codegen_flags: <defaults>
</compile_context>

<pallas_src>
import functools

import jax
import jax.numpy as jnp
from jax.experimental import pallas as pl
from jax.experimental.pallas import tpu as pltpu


def _moving_avg_kernel(x_ref, o_ref, xp_ref, *, kernel_size, stride, pad,
                       l_in, l_out):
    """One (batch-tile, channel-tile) block.

    x_ref : (TB, L, TC)          unpadded input tile
    o_ref : (TB, L_out, TC)      pooled output tile (stride applied in-kernel)
    xp_ref: (TB, L + 2*pad, TC)  replicate-padded sequence, input dtype
    """
    tb, _, tc = x_ref.shape
    x = x_ref[...]

    # Build the replicate-padded sequence in VMEM (no padded HBM copy).
    xp_ref[:, pl.ds(pad, l_in), :] = x
    if pad > 0:
        xp_ref[:, pl.ds(0, pad), :] = jnp.broadcast_to(
            x[:, 0:1, :], (tb, pad, tc))
        xp_ref[:, pl.ds(pad + l_in, pad), :] = jnp.broadcast_to(
            x[:, l_in - 1:l_in, :], (tb, pad, tc))

    # k-tap windowed mean with f32 accumulation.  Only the L_out rows the
    # module emits are computed and stored; for stride > 1 the taps are
    # strided VMEM reads (cheap) so the HBM write stays minimal.
    acc = jnp.zeros((tb, l_out, tc), jnp.float32)
    for j in range(kernel_size):
        if stride == 1:
            tap = xp_ref[:, pl.ds(j, l_out), :]
        else:
            tap = xp_ref[:, pl.ds(j, l_out, stride=stride), :]
        acc = acc + tap.astype(jnp.float32)
    o_ref[...] = (acc * (1.0 / kernel_size)).astype(o_ref.dtype)


def _tpu_vmem_and_cores():
    """Best-effort (VMEM bytes, TensorCores per chip) query with safe fallbacks."""
    vmem = 64 * 1024 * 1024   # conservative (v7x-sized) fallback
    cores = 1
    try:
        info = pltpu.get_tpu_info()
        vmem = int(getattr(info, "vmem_capacity_bytes", vmem))
        for name in ("num_cores", "tensorcore_count", "core_count"):
            val = getattr(info, name, None)
            if val:
                cores = int(val)
                break
    except Exception:
        pass
    # v7x-class parts have 64 MiB VMEM per TensorCore and 2 TCs per chip.
    if cores <= 1 and vmem <= 80 * 1024 * 1024:
        cores = 2
    return vmem, cores


def moving_avg(x, kernel_size, stride):
    """x: (B, L, C) -> (B, L_out, C), matching the PyTorch module forward."""
    assert x.ndim == 3
    assert kernel_size >= 1 and stride >= 1
    b, l, c = x.shape
    pad = (kernel_size - 1) // 2
    l_pad = l + 2 * pad
    assert l_pad >= kernel_size, "sequence too short for kernel_size"
    l_out = (l_pad - kernel_size) // stride + 1
    itemsize = jnp.dtype(x.dtype).itemsize

    # Generation-aware VMEM budget: well above the scoped default, but never
    # more than half the physical VMEM (v7x has only 64 MiB per TensorCore).
    vmem_bytes, cores = _tpu_vmem_and_cores()
    vmem_limit = min(vmem_bytes // 2, 32 * 1024 * 1024)
    budget = (7 * vmem_limit) // 10   # block budget incl. double buffering

    # Approx. VMEM bytes per (batch row x channel) of one grid step:
    # double-buffered in/out blocks + padded-seq scratch + f32 acc / tap temp.
    per_bc = 2 * (l + l_out) * itemsize + l_pad * itemsize + 12 * l_out

    # --- channel tiling (lane axis) --------------------------------------
    if c % 128 == 0:
        c_pad = c
        c_cands = [t for t in range(128, c + 1, 128) if c % t == 0]
    elif c * per_bc <= budget:
        c_pad = c                    # full-C block: no HBM pad/unpad passes
        c_cands = [c]
    else:
        # Last-resort fallback for huge ragged C (rare): pad to 128 and tile.
        c_pad = ((c + 127) // 128) * 128
        c_cands = [t for t in range(128, c_pad + 1, 128) if c_pad % t == 0]
    fitting = [t for t in c_cands if t * per_bc <= budget]
    tc = max(fitting) if fitting else min(c_cands)

    # --- batch tiling (fewer, larger DMAs on a bandwidth-bound op) -------
    b_divs = [d for d in range(1, b + 1) if b % d == 0]
    tb_fit = [d for d in b_divs if d * tc * per_bc <= budget]
    tb = max(tb_fit) if tb_fit else 1

    # Keep >= 2 grid blocks only on multi-TensorCore chips (v7x) so both
    # cores get work; on single-core v5e/v6e the grid is a serial loop and
    # smaller DMAs / extra steps are pure overhead.
    if cores >= 2 and (b // tb) * (c_pad // tc) < 2:
        smaller_tb = [d for d in b_divs if d < tb]
        smaller_tc = [t for t in c_cands if t < tc]
        if smaller_tb:
            tb = max(smaller_tb)
        elif smaller_tc:
            tc = max(smaller_tc)

    xk = x if c_pad == c else jnp.pad(x, ((0, 0), (0, 0), (0, c_pad - c)))

    kernel = functools.partial(
        _moving_avg_kernel,
        kernel_size=kernel_size, stride=stride, pad=pad, l_in=l, l_out=l_out)

    cost = pl.CostEstimate(
        flops=(kernel_size + 1) * b * l_out * c_pad,
        transcendentals=0,
        bytes_accessed=(b * l * c_pad + b * l_out * c_pad) * itemsize)

    out = pl.pallas_call(
        kernel,
        out_shape=jax.ShapeDtypeStruct((b, l_out, c_pad), x.dtype),
        grid_spec=pltpu.PrefetchScalarGridSpec(
            num_scalar_prefetch=0,
            grid=(b // tb, c_pad // tc),
            in_specs=[pl.BlockSpec((tb, l, tc), lambda i, j: (i, 0, j))],
            out_specs=pl.BlockSpec((tb, l_out, tc), lambda i, j: (i, 0, j)),
            scratch_shapes=[pltpu.VMEM((tb, l_pad, tc), x.dtype)],
        ),
        compiler_params=pltpu.CompilerParams(
            dimension_semantics=("parallel", "parallel"),
            vmem_limit_bytes=int(vmem_limit),
        ),
        cost_estimate=cost,
    )(xk)

    if c_pad != c:
        out = out[:, :, :c]
    return out


def _reference_moving_avg(x, kernel_size, stride):
    """Pure-JAX reference mirroring the PyTorch forward."""
    pad = (kernel_size - 1) // 2
    front = jnp.repeat(x[:, 0:1, :], pad, axis=1)
    end = jnp.repeat(x[:, -1:, :], pad, axis=1)
    xp = jnp.concatenate([front, x, end], axis=1)
    l_pad = xp.shape[1]
    l_out = (l_pad - kernel_size) // stride + 1
    outs = []
    for t in range(l_out):
        outs.append(jnp.mean(xp[:, t * stride:t * stride + kernel_size, :],
                             axis=1, keepdims=True))
    return jnp.concatenate(outs, axis=1)


if __name__ == "__main__":
    key = jax.random.PRNGKey(0)
    k1, k2, k3 = jax.random.split(key, 3)

    # Primary config: typical decomposition usage (odd kernel, stride=1).
    x1 = jax.random.normal(k1, (2, 8, 32), dtype=jnp.float32)
    out1 = jax.block_until_ready(moving_avg(x1, 5, 1))
    ref1 = _reference_moving_avg(x1, 5, 1)
    assert out1.shape == ref1.shape, (out1.shape, ref1.shape)
    assert jnp.allclose(out1, ref1, atol=1e-5, rtol=1e-5)

    # Even kernel, stride > 1, tiny non-multiple-of-128 channel count
    # (exercises full-C ragged blocks + in-kernel strided pooling).
    x2 = jax.random.normal(k2, (1, 16, 7), dtype=jnp.float32)
    out2 = jax.block_until_ready(moving_avg(x2, 4, 2))
    ref2 = _reference_moving_avg(x2, 4, 2)
    assert out2.shape == ref2.shape, (out2.shape, ref2.shape)
    assert jnp.allclose(out2, ref2, atol=1e-5, rtol=1e-5)

    # Multiple-of-128 channels + bf16 input (exercises tiled-channel path and
    # input-dtype scratch with f32 accumulation).
    x3 = jax.random.normal(k3, (2, 12, 128), dtype=jnp.bfloat16)
    out3 = jax.block_until_ready(moving_avg(x3, 3, 1))
    ref3 = _reference_moving_avg(x3.astype(jnp.float32), 3, 1).astype(jnp.bfloat16)
    assert out3.shape == ref3.shape, (out3.shape, ref3.shape)
    assert jnp.allclose(out3.astype(jnp.float32), ref3.astype(jnp.float32),
                        atol=2e-2, rtol=2e-2)

    print("KERNEL_OK")
</pallas_src>

<mosaic_0001>
module attributes {stable_mosaic.version = 11 : i64} {
  func.func @_moving_avg_kernel(%arg0: i32, %arg1: i32, %arg2: memref<1x8x32xf32, #tpu.memory_space<vmem>>, %arg3: memref<1x8x32xf32, #tpu.memory_space<vmem>>, %arg4: memref<1x12x32xf32, #tpu.memory_space<vmem>>) attributes {dimension_semantics = [#tpu.dimension_semantics<parallel>, #tpu.dimension_semantics<parallel>], iteration_bounds = array<i64: 2, 1>, scalar_prefetch = 0 : i64, scratch_operands = 1 : i64, tpu.core_type = #tpu.core_type<tc>, window_params = [{transform_indices = @transform_0, window_bounds = array<i64: 1, 8, 32>}, {transform_indices = @transform_1, window_bounds = array<i64: 1, 8, 32>}]} {
    %c0 = arith.constant 0 : index
    %c0_0 = arith.constant 0 : index
    %c0_1 = arith.constant 0 : index
    %0 = vector.load %arg2[%c0, %c0_0, %c0_1] : memref<1x8x32xf32, #tpu.memory_space<vmem>>, vector<1x8x32xf32>
    %c0_2 = arith.constant 0 : index
    %c2 = arith.constant 2 : index
    %c0_3 = arith.constant 0 : index
    %1 = vector.load %arg4[%c0_2, %c2, %c0_3] : memref<1x12x32xf32, #tpu.memory_space<vmem>>, vector<1x8x32xf32>
    tpu.vector_store %arg4[%c0_2, %c2, %c0_3], %0 {strides = array<i32>} : memref<1x12x32xf32, #tpu.memory_space<vmem>>, vector<1x8x32xf32>,
    %2 = vector.extract_strided_slice %0 {offsets = [0, 0, 0], sizes = [1, 1, 32], strides = [1, 1, 1]} : vector<1x8x32xf32> to vector<1x1x32xf32>
    %3 = vector.shape_cast %2 : vector<1x1x32xf32> to vector<1x1x32xf32>
    %4 = vector.broadcast %3 : vector<1x1x32xf32> to vector<1x2x32xf32>
    %c0_4 = arith.constant 0 : index
    %c0_5 = arith.constant 0 : index
    %c0_6 = arith.constant 0 : index
    %5 = vector.load %arg4[%c0_4, %c0_5, %c0_6] : memref<1x12x32xf32, #tpu.memory_space<vmem>>, vector<1x2x32xf32>
    tpu.vector_store %arg4[%c0_4, %c0_5, %c0_6], %4 {strides = array<i32>} : memref<1x12x32xf32, #tpu.memory_space<vmem>>, vector<1x2x32xf32>,
    %6 = vector.extract_strided_slice %0 {offsets = [0, 7, 0], sizes = [1, 1, 32], strides = [1, 1, 1]} : vector<1x8x32xf32> to vector<1x1x32xf32>
    %7 = vector.shape_cast %6 : vector<1x1x32xf32> to vector<1x1x32xf32>
    %8 = vector.broadcast %7 : vector<1x1x32xf32> to vector<1x2x32xf32>
    %c0_7 = arith.constant 0 : index
    %c10 = arith.constant 10 : index
    %c0_8 = arith.constant 0 : index
    %9 = vector.load %arg4[%c0_7, %c10, %c0_8] : memref<1x12x32xf32, #tpu.memory_space<vmem>>, vector<1x2x32xf32>
    tpu.vector_store %arg4[%c0_7, %c10, %c0_8], %8 {strides = array<i32>} : memref<1x12x32xf32, #tpu.memory_space<vmem>>, vector<1x2x32xf32>,
    %cst = arith.constant 0.000000e+00 : f32
    %10 = vector.broadcast %cst : f32 to vector<1x8x32xf32>
    %c0_9 = arith.constant 0 : index
    %c0_10 = arith.constant 0 : index
    %c0_11 = arith.constant 0 : index
    %11 = vector.load %arg4[%c0_9, %c0_10, %c0_11] : memref<1x12x32xf32, #tpu.memory_space<vmem>>, vector<1x8x32xf32>
    %12 = arith.addf %10, %11 : vector<1x8x32xf32>
    %c0_12 = arith.constant 0 : index
    %c1 = arith.constant 1 : index
    %c0_13 = arith.constant 0 : index
    %13 = vector.load %arg4[%c0_12, %c1, %c0_13] : memref<1x12x32xf32, #tpu.memory_space<vmem>>, vector<1x8x32xf32>
    %14 = arith.addf %12, %13 : vector<1x8x32xf32>
    %c0_14 = arith.constant 0 : index
    %c2_15 = arith.constant 2 : index
    %c0_16 = arith.constant 0 : index
    %15 = vector.load %arg4[%c0_14, %c2_15, %c0_16] : memref<1x12x32xf32, #tpu.memory_space<vmem>>, vector<1x8x32xf32>
    %16 = arith.addf %14, %15 : vector<1x8x32xf32>
    %c0_17 = arith.constant 0 : index
    %c3 = arith.constant 3 : index
    %c0_18 = arith.constant 0 : index
    %17 = vector.load %arg4[%c0_17, %c3, %c0_18] : memref<1x12x32xf32, #tpu.memory_space<vmem>>, vector<1x8x32xf32>
    %18 = arith.addf %16, %17 : vector<1x8x32xf32>
    %c0_19 = arith.constant 0 : index
    %c4 = arith.constant 4 : index
    %c0_20 = arith.constant 0 : index
    %19 = vector.load %arg4[%c0_19, %c4, %c0_20] : memref<1x12x32xf32, #tpu.memory_space<vmem>>, vector<1x8x32xf32>
    %20 = arith.addf %18, %19 : vector<1x8x32xf32>
    %cst_21 = arith.constant 2.000000e-01 : f32
    %21 = vector.broadcast %cst_21 : f32 to vector<1x8x32xf32>
    %22 = arith.mulf %20, %21 : vector<1x8x32xf32>
    %c0_22 = arith.constant 0 : index
    %c0_23 = arith.constant 0 : index
    %c0_24 = arith.constant 0 : index
    %23 = vector.load %arg3[%c0_22, %c0_23, %c0_24] : memref<1x8x32xf32, #tpu.memory_space<vmem>>, vector<1x8x32xf32>
    tpu.vector_store %arg3[%c0_22, %c0_23, %c0_24], %22 {strides = array<i32>} : memref<1x8x32xf32, #tpu.memory_space<vmem>>, vector<1x8x32xf32>,
    return
  }
  func.func @transform_0(%arg0: i32, %arg1: i32) -> (i32, i32, i32) {
    %c0_i32 = arith.constant 0 : i32
    %c0_i32_0 = arith.constant 0 : i32
    return %arg0, %c0_i32, %arg1 : i32, i32, i32
  }
  func.func @transform_1(%arg0: i32, %arg1: i32) -> (i32, i32, i32) {
    %c0_i32 = arith.constant 0 : i32
    %c0_i32_0 = arith.constant 0 : i32
    return %arg0, %c0_i32, %arg1 : i32, i32, i32
  }
}

</mosaic_0001>

<llo_original>
// kernel: tpu_custom_call.1
$region0: #{tpu_custom_call.1}
  #allocation0 [shape = 'u32[]', space=smem, size = 0x4, offset = 0x4, fixed_abs, tag = 'smem constant byte address 0x4 - core index']
  #allocation1 [shape = 'u32[144,128]{1,0:T(1,128)}', space=vmem, size = 0x12000, scoped, tag = 'internal scratch']
  #allocation2 [shape = 'f32[1,12,32]{2,1,0:T(8,128)}', space=vmem, size = 0x2000, scoped, tag = 'scratch operand']
  %s0 = inlined_call_operand.hbm [shape: f32[2,8,32], index: 0, kind: input, shape index: {}]
  %s1 = inlined_call_operand.hbm [shape: f32[2,8,32], index: 1, kind: output, shape index: {}]
  %s2 = sld [smem:[#allocation0]]
  $region41: #{tpu_custom_call.1} parent=0
    _
  %s4 = ssub.s32 1, %s2
  %s5 = scalar_select 0, %s4, %s2
  $region1: #{tpu_custom_call.1} parent=0
    #allocation3 [shape = 'u8[8192]{0}', space=vmem, size = 0x2000, scoped, tag = 'input window, operand 0']
    #allocation4 [shape = 's32[2]{0}', space=sflag, size = 0x8, scoped, tag = 'scoped memory for tpu_custom_call.1']
    #allocation5 [shape = 's32[2]{0}', space=sflag, size = 0x8, scoped, tag = 'scoped memory for tpu_custom_call.1']
    #allocation6 [shape = 'u8[8192]{0}', space=vmem, size = 0x2000, scoped, tag = 'output window, operand 0']
    %6 = vsyncpa [#allocation4], 0
    %s7 = scalar_lea.sflag [#allocation4], 1
    %8 = vsyncpa %s7, 0
    %9 = vsyncpa [#allocation5], 0
    %s10 = scalar_lea.sflag [#allocation5], 1
    %11 = vsyncpa %s10, 0
    loop: start=0, step=1, limit=4
    $region2: #{tpu_custom_call.1} parent=1 // loop_pre_header
      _
    $region3: #{tpu_custom_call.1} parent=1 // loop_header
      %s13 = sphi 0, %s17
      %p14 = scmp.ge.s32.totalorder %s13, 4
      %s20 = sphi 0, %s32
      %s21 = sphi 0, %s28
      %s22 = sphi 0, %s20
      %s23 = sphi 0, %s21
      %s24 = sphi 0, %s22
      %s25 = sphi 0, %s23
      %s37 = sphi 0, %s39
      %s40 = sphi 0, %s37
      %s41 = sphi 0, %s40
      %s57 = sphi 0, %s41
      %s65 = sphi 0, %s67
      %s68 = sphi 0, %s65
      %s69 = sphi 0, %s68
      %s85 = sphi 0, %s69
    $region4: #{tpu_custom_call.1} parent=1 // loop_header_branch
      %16 = sbr.rel (%p14) target = $region8
    $region5: #{tpu_custom_call.1} parent=1 // loop_body
      %s18 = ssub.s32 %s13, 1
      %s19 = ssub.s32 %s13, 2
      %s26 = sadd.s32 1, %s21
      %p27 = scmp.ge.s32.totalorder %s26, 1
      %s28 = scalar_select %p27, 0, %s26
      %s29 = sadd.s32 1, %s20
      %s30 = scalar_select %p27, %s29, %s20
      %p31 = scmp.ge.s32.totalorder %s30, 2
      %s32 = scalar_select %p31, 0, %s30
      %s33 = ssub.s32 %s20, %s32
      %s34 = ssub.s32 %s21, %s28
      %s35 = sor.u32 %s33, %s34
      %p36 = scmp.eq.s32.totalorder %s35, 0
      %s38 = sadd.s32 %s37, 1
      %s39 = scalar_select %p36, %s37, %s38
      %p42 = pneg %p36
      %p43 = scmp.eq.s32.totalorder %s13, 1
      %p44 = por %p42, %p43
      %p45 = scmp.ne.s32.totalorder %s37, %s40
      %p46 = scmp.eq.s32.totalorder %s13, 0
      %p47 = por %p45, %p46
      %p48 = scmp.ne.s32.totalorder %s37, %s40
      %p49 = scmp.eq.s32.totalorder %s18, 1
      %p50 = por %p48, %p49
      %p51 = scmp.ne.s32.totalorder %s40, %s41
      %p52 = scmp.eq.s32.totalorder %s18, 0
      %p53 = por %p51, %p52
      %p54 = scmp.ne.s32.totalorder %s40, %s41
      %p55 = scmp.eq.s32.totalorder %s19, 1
      %p56 = por %p54, %p55
      %p58 = scmp.ne.s32.totalorder %s41, %s57
      %p59 = scmp.eq.s32.totalorder %s19, 0
      %p60 = por %p58, %p59
      %s61 = ssub.s32 %s20, %s32
      %s62 = ssub.s32 %s21, %s28
      %s63 = sor.u32 %s61, %s62
      %p64 = scmp.eq.s32.totalorder %s63, 0
      %s66 = sadd.s32 %s65, 1
      %s67 = scalar_select %p64, %s65, %s66
      %p70 = pneg %p64
      %p71 = scmp.eq.s32.totalorder %s13, 1
      %p72 = por %p70, %p71
      %p73 = scmp.ne.s32.totalorder %s65, %s68
      %p74 = scmp.eq.s32.totalorder %s13, 0
      %p75 = por %p73, %p74
      %p76 = scmp.ne.s32.totalorder %s65, %s68
      %p77 = scmp.eq.s32.totalorder %s18, 1
      %p78 = por %p76, %p77
      %p79 = scmp.ne.s32.totalorder %s68, %s69
      %p80 = scmp.eq.s32.totalorder %s18, 0
      %p81 = por %p79, %p80
      %p82 = scmp.ne.s32.totalorder %s68, %s69
      %p83 = scmp.eq.s32.totalorder %s19, 1
      %p84 = por %p82, %p83
      %p86 = scmp.ne.s32.totalorder %s69, %s85
      %p87 = scmp.eq.s32.totalorder %s19, 0
      %p88 = por %p86, %p87
      %p89 = scmp.le.s32.totalorder 1, %s13
      %p90 = scmp.lt.s32.totalorder %s13, 3
      %p91 = pnand %p89, %p90
      %p92 = pneg %p91
      // Predicated region
      $region9: #{tpu_custom_call.1} parent=5 // pred_check
        _
      $region10: #{tpu_custom_call.1} parent=5 // pred_check_branch
        %94 = sbr.rel (%p91) target = $region12
      $region11: #{tpu_custom_call.1} parent=5 // pred_region
        %s95 = ssub.s32 %s13, 1
      $region12: #{tpu_custom_call.1} parent=5 // pred_fallthru
        _
      %p96 = scmp.lt.s32.totalorder %s13, 2
      // Predicated region
      $region13: #{tpu_custom_call.1} parent=5 // pred_check
        %p97 = pneg %p96
      $region14: #{tpu_custom_call.1} parent=5 // pred_check_branch
        %99 = sbr.rel (%p97) target = $region16
      $region15: #{tpu_custom_call.1} parent=5 // pred_region
        // Predicated region
        $region17: #{tpu_custom_call.1} parent=15 // pred_check
          %p100 = pneg %p47
        $region18: #{tpu_custom_call.1} parent=15 // pred_check_branch
          %102 = sbr.rel (%p100) target = $region20
        $region19: #{tpu_custom_call.1} parent=15 // pred_region
          %s103 = sand.u32 %s37, 1
          %s104 = scalar_lea.sflag [#allocation4], %s103
          %s105 = sand.u32 %s37, 1
          %s106 = smul.addr %s105, 8
          %s107 = scalar_lea.vmem [#allocation3], %s106
          %s109 = ssub.s32 128, 128
          %110 = vsyncadd %s104, %s109
          %s111 = sadd.s32 %s21, %s20
          %s112 = smul.addr %s111, 128
          %s113 = scalar_lea.hbm %s0, %s112
          %s115 = sshll.u32 %s107, 4
          %s116 = int_to_ptr.vmem [resolvable:$true] %s115
          %118 = dma.hbm_to_vmem [thread:$0]  %s113, 128, %s116, %s104
        $region20: #{tpu_custom_call.1} parent=15 // pred_fallthru
          _
      $region16: #{tpu_custom_call.1} parent=5 // pred_fallthru
        _
      %p119 = scmp.le.s32.totalorder 1, %s13
      %p120 = scmp.lt.s32.totalorder %s13, 3
      %p121 = pnand %p119, %p120
      %p122 = pneg %p121
      // Predicated region
      $region21: #{tpu_custom_call.1} parent=5 // pred_check
        _
      $region22: #{tpu_custom_call.1} parent=5 // pred_check_branch
        %124 = sbr.rel (%p121) target = $region24
      $region23: #{tpu_custom_call.1} parent=5 // pred_region
        %s125 = ssub.s32 %s13, 1
        %s126 = sand.u32 %s40, 1
        %s127 = scalar_lea.sflag [#allocation4], %s126
        %s128 = sand.u32 %s40, 1
        %s129 = smul.addr %s128, 8
        %s130 = scalar_lea.vmem [#allocation3], %s129
        // Predicated region
        $region25: #{tpu_custom_call.1} parent=23 // pred_check
          %p131 = pneg %p53
        $region26: #{tpu_custom_call.1} parent=23 // pred_check_branch
          %133 = sbr.rel (%p131) target = $region28
        $region27: #{tpu_custom_call.1} parent=23 // pred_region
          %134 = dma.done %s127, 128
        $region28: #{tpu_custom_call.1} parent=23 // pred_fallthru
          _
        %s135 = sand.u32 %s40, 1
        %s136 = scalar_lea.sflag [#allocation4], %s135
        %s137 = sand.u32 %s40, 1
        %s138 = smul.addr %s137, 8
        %s139 = scalar_lea.vmem [#allocation3], %s138
        %p140 = pneg %p53
        %p141 = pneg %p50
        %p142 = pneg %p81
        %p143 = pneg %p78
        %s144 = sand.u32 %s68, 1
        %s145 = scalar_lea.sflag [#allocation5], %s144
        %s146 = sand.u32 %s68, 1
        %s147 = smul.addr %s146, 8
        %s148 = scalar_lea.vmem [#allocation6], %s147
        %v149 = vld [vmem:[%s130] sm:$0xff]
        %vm150 = vcmask 261120
        %151 = vst.msk [vmem:[#allocation2 + $0x2] sm:$0xff] %vm150, %v149
        %v152 = vlaneseq
        %v153 = vshrl.u32 %v152, 7
        %v154 = vsub.s32 0, %v153
        %v155 = vrot.slane %v149, %v154
        %vm156 = vcmask 254976
        %157 = vst.msk [vmem:[#allocation2] sm:$0x3] %vm156, %v155
        %v158 = vlaneseq
        %v159 = vshrl.u32 %v158, 7
        %v160 = vsub.s32 7, %v159
        %v161 = vrot.slane %v149, %v160
        %162 = vst.msk [vmem:[#allocation2 + $0xa] sm:$0x3] %vm156, %v161
        %v163 = vld [vmem:[#allocation2] sm:$0xff]
        %v164 = vadd.f32 %v163, 0.0
        %v165 = vld [vmem:[#allocation2 + $0x1] sm:$0xff]
        %v166 = vadd.f32 %v164, %v165
        %v167 = vld [vmem:[#allocation2 + $0x2] sm:$0xff]
        %v168 = vadd.f32 %v166, %v167
        %v169 = vld [vmem:[#allocation2 + $0x3] sm:$0xff]
        %v170 = vadd.f32 %v168, %v169
        %v171 = vld [vmem:[#allocation2 + $0x4] sm:$0xff]
        %v172 = vadd.f32 %v170, %v171
        %v173 = vmul.f32 %v172, 0.2
        %174 = vst.msk [vmem:[%s148] sm:$0xff] %vm150, %v173
        %s175 = sand.u32 %s68, 1
        %s176 = scalar_lea.sflag [#allocation5], %s175
        %s177 = sand.u32 %s68, 1
        %s178 = smul.addr %s177, 8
        %s179 = scalar_lea.vmem [#allocation6], %s178
        // Predicated region
        $region29: #{tpu_custom_call.1} parent=23 // pred_check
          %p180 = pneg %p78
        $region30: #{tpu_custom_call.1} parent=23 // pred_check_branch
          %182 = sbr.rel (%p180) target = $region32
        $region31: #{tpu_custom_call.1} parent=23 // pred_region
          %s184 = ssub.s32 128, 128
          %185 = vsyncadd %s176, %s184
          %s186 = sadd.s32 %s23, %s22
          %s187 = smul.addr %s186, 128
          %s188 = scalar_lea.hbm %s1, %s187
          %s190 = sshll.u32 %s179, 4
          %s191 = int_to_ptr.vmem [resolvable:$true] %s190
          %193 = dma.vmem_to_hbm [thread:$0]  %s191, 128, %s188, %s176
        $region32: #{tpu_custom_call.1} parent=23 // pred_fallthru
          _
      $region24: #{tpu_custom_call.1} parent=5 // pred_fallthru
        _
      %p194 = scmp.le.s32.totalorder 2, %s13
      // Predicated region
      $region33: #{tpu_custom_call.1} parent=5 // pred_check
        %p195 = pneg %p194
      $region34: #{tpu_custom_call.1} parent=5 // pred_check_branch
        %197 = sbr.rel (%p195) target = $region36
      $region35: #{tpu_custom_call.1} parent=5 // pred_region
        %s198 = ssub.s32 %s13, 2
        // Predicated region
        $region37: #{tpu_custom_call.1} parent=35 // pred_check
          %p199 = pneg %p84
        $region38: #{tpu_custom_call.1} parent=35 // pred_check_branch
          %201 = sbr.rel (%p199) target = $region40
        $region39: #{tpu_custom_call.1} parent=35 // pred_region
          %s202 = sand.u32 %s69, 1
          %s203 = scalar_lea.sflag [#allocation5], %s202
          %s204 = sand.u32 %s69, 1
          %s205 = smul.addr %s204, 8
          %s206 = scalar_lea.vmem [#allocation6], %s205
          %207 = dma.done %s203, 128
        $region40: #{tpu_custom_call.1} parent=35 // pred_fallthru
          _
      $region36: #{tpu_custom_call.1} parent=5 // pred_fallthru
        _
    $region6: #{tpu_custom_call.1} parent=1 // loop_footer
      %s17 = sadd.s32 1, %s13
    $region7: #{tpu_custom_call.1} parent=1 // loop_footer_branch
      %12 = sbr.rel target = $region3
    $region8: #{tpu_custom_call.1} parent=1 // loop_exit
      _
    %208 = vsyncpa [#allocation4], 1
    %s209 = scalar_lea.sflag [#allocation4], 1
    %210 = vsyncpa %s209, 1
    %211 = vsyncpa [#allocation5], 1
    %s212 = scalar_lea.sflag [#allocation5], 1
    %213 = vsyncpa %s212, 1

</llo_original>
